<compile_context>
chip_gen: v6e
topology: v6e:2x2x1
jax: 0.10.0
libtpu: 0.0.40
codegen_flags: <defaults>
</compile_context>

<pallas_src>
import math
import functools

import jax
import jax.numpy as jnp
from jax.experimental import pallas as pl
from jax.experimental.pallas import tpu as pltpu


_HALO_BLK = 128  # lane-block used to fetch the conv halo when L is tiled


def _elu(x):
    # ELU(alpha=1) in f32; min() keeps exp off large positives (EUP hygiene).
    return jnp.where(x > 0, x, jnp.exp(jnp.minimum(x, 0.0)) - 1.0)


def _choose_lt(l_out):
    """Pick a lane-dense L tile (multiple of 128) or a single full block."""
    if l_out <= 256:
        return l_out, 1
    lt = 512 if l_out >= 1024 else 256
    return lt, -(-l_out // lt)


# ---------------------------------------------------------------------------
# SConv1d kernel: fused ELU + single deep-contraction matmul per L tile
# ---------------------------------------------------------------------------
def _conv_kernel(*refs, taps, dilation, lt, halo, apply_elu, tiled):
    if tiled:
        xm_ref, xh_ref, w_ref, b_ref, o_ref = refs
        x = xm_ref[0]                                       # (Cp, lt) f32
        if halo > 0:
            x = jnp.concatenate([x, xh_ref[0, :, :halo]], axis=1)
    else:
        x_ref, w_ref, b_ref, o_ref = refs
        x = x_ref[0, :, :lt + halo]                         # (Cp, lt+halo) f32
    if apply_elu:
        x = _elu(x)
    if taps > 1:
        # Stack the K shifted slices along sublanes -> one (taps*Cp, lt)
        # operand so a single MXU push uses a taps*Cp-deep contraction.
        xk = jnp.concatenate(
            [x[:, k * dilation:k * dilation + lt] for k in range(taps)], axis=0)
    else:
        xk = x[:, :lt]
    acc = jnp.dot(w_ref[...], xk.astype(jnp.bfloat16),
                  preferred_element_type=jnp.float32)       # (Cout, lt)
    o_ref[0] = (acc + b_ref[...]).astype(o_ref.dtype)


def conv1d_pallas(x_prep, w_mat, bias, *, taps, dilation, l_out, apply_elu):
    B, Cp, Lp = x_prep.shape
    Cout = w_mat.shape[0]
    halo = (taps - 1) * dilation
    lt, n_lt = _choose_lt(l_out)

    if n_lt == 1:
        kernel = functools.partial(_conv_kernel, taps=taps, dilation=dilation,
                                   lt=l_out, halo=halo, apply_elu=apply_elu,
                                   tiled=False)
        return pl.pallas_call(
            kernel,
            out_shape=jax.ShapeDtypeStruct((B, Cout, l_out), jnp.float32),
            grid=(B,),
            in_specs=[
                pl.BlockSpec((1, Cp, Lp), lambda b: (b, 0, 0)),
                pl.BlockSpec((Cout, taps * Cp), lambda b: (0, 0)),   # resident
                pl.BlockSpec((Cout, 1), lambda b: (0, 0)),           # resident
            ],
            out_specs=pl.BlockSpec((1, Cout, l_out), lambda b: (b, 0, 0)),
            compiler_params=pltpu.CompilerParams(
                dimension_semantics=("parallel",)),
        )(x_prep, w_mat, bias)

    # L-tiled variant: lane-dense output tiles, BlockSpec double-buffering of
    # x over L, two parallel grid axes (B, L) for v7x's 2 TensorCores.
    assert lt % _HALO_BLK == 0 and halo <= _HALO_BLK
    l_pad = n_lt * lt
    lp_need = l_pad + _HALO_BLK
    if Lp < lp_need:
        x_prep = jnp.pad(x_prep, ((0, 0), (0, 0), (0, lp_need - Lp)))
    kernel = functools.partial(_conv_kernel, taps=taps, dilation=dilation,
                               lt=lt, halo=halo, apply_elu=apply_elu,
                               tiled=True)
    out = pl.pallas_call(
        kernel,
        out_shape=jax.ShapeDtypeStruct((B, Cout, l_pad), jnp.float32),
        grid=(B, n_lt),
        in_specs=[
            pl.BlockSpec((1, Cp, lt), lambda b, j: (b, 0, j)),
            # halo comes from the next 128-lane block of the same array
            pl.BlockSpec((1, Cp, _HALO_BLK),
                         lambda b, j: (b, 0, (j + 1) * (lt // _HALO_BLK))),
            pl.BlockSpec((Cout, taps * Cp), lambda b, j: (0, 0)),
            pl.BlockSpec((Cout, 1), lambda b, j: (0, 0)),
        ],
        out_specs=pl.BlockSpec((1, Cout, lt), lambda b, j: (b, 0, j)),
        compiler_params=pltpu.CompilerParams(
            dimension_semantics=("parallel", "parallel")),
    )(x_prep, x_prep, w_mat, bias)
    return out[..., :l_out]


# ---------------------------------------------------------------------------
# SConv1d glue: exact encodec padding semantics; stride folded into channels
# ---------------------------------------------------------------------------
def _pad1d_reflect(x, pad_l, pad_r):
    if pad_l == 0 and pad_r == 0:
        return x
    L = x.shape[-1]
    max_pad = max(pad_l, pad_r)
    extra = 0
    if L <= max_pad:                                        # pad1d() corner case
        extra = max_pad - L + 1
        x = jnp.pad(x, ((0, 0), (0, 0), (0, extra)))
    padded = jnp.pad(x, ((0, 0), (0, 0), (pad_l, pad_r)), mode="reflect")
    end = padded.shape[-1] - extra
    return padded[..., :end]


def sconv1d(x, p):
    # SConv1d(causal=False, pad_mode='reflect', norm='weight') at init.
    B, Cin, L = x.shape
    K, stride, dilation = p["k"], p["stride"], p["dilation"]
    eff_k = (K - 1) * dilation + 1
    padding_total = eff_k - stride
    n_frames = (L - eff_k + padding_total) / stride + 1
    ideal_length = (math.ceil(n_frames) - 1) * stride + (eff_k - padding_total)
    extra = ideal_length - L
    pad_right = padding_total // 2
    pad_left = padding_total - pad_right
    xp = _pad1d_reflect(x, pad_left, pad_right + extra)
    Lp = xp.shape[-1]
    L_out = (Lp - eff_k) // stride + 1

    if stride == 1:
        x_prep, dil = xp, dilation
    else:
        # stride > 1 (dilation == 1 in SEANet): fold stride into channels so
        # the kernel sees a stride-1 conv.  Weights were pre-folded at init.
        # TODO(synk): fold this space-to-depth relayout into the producing
        # layer's output store (or strided in-kernel reads) to avoid one extra
        # host-side pass over the activation.
        P = p["taps"]
        Lu = L_out + P - 1
        Lp_need = Lu * stride
        if Lp_need > Lp:
            xp = jnp.pad(xp, ((0, 0), (0, 0), (0, Lp_need - Lp)))
        x_prep = (xp[..., :Lp_need].reshape(B, Cin, Lu, stride)
                  .transpose(0, 1, 3, 2).reshape(B, Cin * stride, Lu))
        dil = 1
    return conv1d_pallas(x_prep, p["w_mat"], p["b"], taps=p["taps"],
                         dilation=dil, l_out=L_out, apply_elu=p["elu"])


# ---------------------------------------------------------------------------
# Fused residual-block tail: W2 @ ELU(y) + Ws @ x + (b2 + bs)
# ---------------------------------------------------------------------------
def _res_tail_kernel(y_ref, x_ref, w2_ref, ws_ref, b_ref, o_ref):
    y = _elu(y_ref[0])                                      # (H, lt) f32
    acc = jnp.dot(w2_ref[...], y.astype(jnp.bfloat16),
                  preferred_element_type=jnp.float32)
    acc = acc + jnp.dot(ws_ref[...], x_ref[0].astype(jnp.bfloat16),
                        preferred_element_type=jnp.float32)
    o_ref[0] = (acc + b_ref[...]).astype(o_ref.dtype)


def res_tail_pallas(y, x, w2_mat, ws_mat, b_comb):
    B, H, L = y.shape
    Cd = x.shape[1]
    lt, n_lt = _choose_lt(L)
    l_pad = n_lt * lt
    if l_pad > L:
        y = jnp.pad(y, ((0, 0), (0, 0), (0, l_pad - L)))
        x = jnp.pad(x, ((0, 0), (0, 0), (0, l_pad - L)))
    out = pl.pallas_call(
        _res_tail_kernel,
        out_shape=jax.ShapeDtypeStruct((B, Cd, l_pad), jnp.float32),
        grid=(B, n_lt),
        in_specs=[
            pl.BlockSpec((1, H, lt), lambda b, j: (b, 0, j)),
            pl.BlockSpec((1, Cd, lt), lambda b, j: (b, 0, j)),
            pl.BlockSpec((Cd, H), lambda b, j: (0, 0)),
            pl.BlockSpec((Cd, Cd), lambda b, j: (0, 0)),
            pl.BlockSpec((Cd, 1), lambda b, j: (0, 0)),
        ],
        out_specs=pl.BlockSpec((1, Cd, lt), lambda b, j: (b, 0, j)),
        compiler_params=pltpu.CompilerParams(
            dimension_semantics=("parallel", "parallel")),
    )(y, x, w2_mat, ws_mat, b_comb)
    return out[..., :L] if l_pad > L else out


# ---------------------------------------------------------------------------
# SLSTM Pallas kernel (one layer): fused 4-gate projection + per-step matmul
# ---------------------------------------------------------------------------
def _lstm_kernel(*refs, seq_len, batch, dim, transpose_in, transpose_out,
                 add_skip):
    n_in = 5 if add_skip else 4
    x_ref, wih_ref, whh_ref, b_ref = refs[0], refs[1], refs[2], refs[3]
    skip_ref = refs[4] if add_skip else None
    o_ref = refs[n_in]
    h_sc, c_sc, gates_sc = refs[n_in + 1], refs[n_in + 2], refs[n_in + 3]
    ys_sc = refs[n_in + 4] if transpose_out else None
    o_tgt = ys_sc if transpose_out else o_ref               # (B, T, D) target

    # ---- hoisted input projection: ONE matmul for all 4 gates & all steps ----
    if transpose_in:
        xs = [x_ref[b].T for b in range(batch)]             # (D,T) -> (T,D)
    else:
        xs = [x_ref[b] for b in range(batch)]               # already (T,D)
    x2d = xs[0] if batch == 1 else jnp.concatenate(xs, axis=0)   # (B*T, D)
    gates_sc[...] = (jnp.dot(x2d.astype(jnp.bfloat16), wih_ref[...],
                             preferred_element_type=jnp.float32)
                     + b_ref[...])                          # (B*T, 4D) f32

    h_sc[...] = jnp.zeros_like(h_sc)
    c_sc[...] = jnp.zeros_like(c_sc)

    # ---- recurrence: one (B, D) @ (D, 4D) MXU push per step ----
    def step(t, carry):
        h = h_sc[...]                                       # (B, D) f32
        c = c_sc[...]
        rows = [gates_sc[pl.ds(b * seq_len + t, 1), :] for b in range(batch)]
        gt = rows[0] if batch == 1 else jnp.concatenate(rows, axis=0)  # (B,4D)
        pre = gt + jnp.dot(h.astype(jnp.bfloat16), whh_ref[...],
                           preferred_element_type=jnp.float32)
        i_g = jax.nn.sigmoid(pre[:, 0 * dim:1 * dim])
        f_g = jax.nn.sigmoid(pre[:, 1 * dim:2 * dim])
        g_g = jnp.tanh(pre[:, 2 * dim:3 * dim])
        o_g = jax.nn.sigmoid(pre[:, 3 * dim:4 * dim])
        c_new = f_g * c + i_g * g_g
        h_new = o_g * jnp.tanh(c_new)
        h_sc[...] = h_new
        c_sc[...] = c_new
        for b in range(batch):                              # dense row stores
            o_tgt[b, pl.ds(t, 1), :] = h_new[b:b + 1, :]
        return carry

    jax.lax.fori_loop(0, seq_len, step, 0, unroll=2)

    # ---- epilogue: back to conv-native (B, D, T) with SLSTM skip fused ----
    if transpose_out:
        for b in range(batch):
            ob = ys_sc[b].T                                 # (D, T)
            if add_skip:
                ob = ob + skip_ref[b]
            o_ref[b] = ob


def lstm_layer_pallas(x, wih_t, whh_t, bias, *, transpose_in, transpose_out,
                      skip=None):
    if transpose_in:
        B, D, T = x.shape
    else:
        B, T, D = x.shape
    add_skip = skip is not None
    assert not add_skip or transpose_out
    out_shape = (B, D, T) if transpose_out else (B, T, D)
    kernel = functools.partial(
        _lstm_kernel, seq_len=T, batch=B, dim=D, transpose_in=transpose_in,
        transpose_out=transpose_out, add_skip=add_skip)
    in_specs = [
        pl.BlockSpec(x.shape, lambda i: (0, 0, 0)),
        pl.BlockSpec((D, 4 * D), lambda i: (0, 0)),
        pl.BlockSpec((D, 4 * D), lambda i: (0, 0)),
        pl.BlockSpec((1, 4 * D), lambda i: (0, 0)),
    ]
    args = [x, wih_t, whh_t, bias]
    if add_skip:
        in_specs.append(pl.BlockSpec((B, D, T), lambda i: (0, 0, 0)))
        args.append(skip)
    scratch = [pltpu.VMEM((B, D), jnp.float32),             # h
               pltpu.VMEM((B, D), jnp.float32),             # c
               pltpu.VMEM((B * T, 4 * D), jnp.float32)]     # fused gate pre-act
    if transpose_out:
        scratch.append(pltpu.VMEM((B, T, D), jnp.float32))  # y staging
    # TODO(synk): chunk the time axis (emit_pipeline over x/gates/y slabs and
    # bf16 gate scratch) so long sequences fit v7x's 64 MiB VMEM and the
    # HBM<->VMEM DMA overlaps the recurrence; full-T residency is fine here.
    return pl.pallas_call(
        kernel,
        out_shape=jax.ShapeDtypeStruct(out_shape, jnp.float32),
        grid=(1,),
        in_specs=in_specs,
        out_specs=pl.BlockSpec(out_shape, lambda i: (0, 0, 0)),
        scratch_shapes=scratch,
        compiler_params=pltpu.CompilerParams(
            dimension_semantics=("arbitrary",)),
    )(*args)


def slstm(x_bct, layers):
    # SLSTM.forward: num_layers LSTM over time, skip add of the input, with
    # the (B,C,T)<->(T,B,C) permutes fused into the boundary kernels.
    n = len(layers)
    y = x_bct
    for idx, (wih_t, whh_t, bias) in enumerate(layers):
        first, last = idx == 0, idx == n - 1
        y = lstm_layer_pallas(y, wih_t, whh_t, bias, transpose_in=first,
                              transpose_out=last,
                              skip=x_bct if last else None)
    return y


# ---------------------------------------------------------------------------
# SEANetEncoder: deterministic parameter init (weights pre-transformed) + fwd
# ---------------------------------------------------------------------------
def _conv_init(key, cin, cout, k):
    kw, kb = jax.random.split(key)
    scale = 1.0 / math.sqrt(cin * k)
    w = jax.random.normal(kw, (cout, cin, k), jnp.float32) * scale
    b = jax.random.normal(kb, (cout,), jnp.float32) * scale
    return w, b


def _prep_conv(w, b, *, stride, dilation, elu):
    # norm='weight' (weight_norm) == identity reparametrization at init.
    cout, cin, k = w.shape
    if stride == 1:
        taps, cp, w_fold = k, cin, w
    else:
        assert dilation == 1, "stride>1 with dilation>1 is unused by SEANet"
        taps = -(-k // stride)
        kp = taps * stride
        w_pad = jnp.pad(w, ((0, 0), (0, 0), (0, kp - k)))
        w_fold = (w_pad.reshape(cout, cin, taps, stride).transpose(0, 1, 3, 2)
                  .reshape(cout, cin * stride, taps))
        cp = cin * stride
        dilation = 1
    w_mat = jnp.transpose(w_fold, (0, 2, 1)).reshape(cout, taps * cp)
    return dict(w_mat=w_mat.astype(jnp.bfloat16),
                b=b.reshape(cout, 1).astype(jnp.float32),
                k=k, stride=stride, dilation=dilation, taps=taps, elu=elu)


def init_seanet_encoder(key, *, channels, dimension, n_filters, ratios,
                        n_residual_layers, kernel_size, last_kernel_size,
                        residual_kernel_size, dilation_base, compress, lstm):
    ratios = list(reversed(list(ratios)))
    keys = iter(jax.random.split(key, 256))
    ops = []
    mult = 1
    w, b = _conv_init(next(keys), channels, mult * n_filters, kernel_size)
    ops.append(("conv", _prep_conv(w, b, stride=1, dilation=1, elu=False)))
    for ratio in ratios:
        for j in range(n_residual_layers):
            dim = mult * n_filters
            hidden = dim // compress
            w1, b1 = _conv_init(next(keys), dim, hidden, residual_kernel_size)
            w2, b2 = _conv_init(next(keys), hidden, dim, 1)
            ws, bs = _conv_init(next(keys), dim, dim, 1)   # true_skip=False
            ops.append(("resblock", dict(
                c1=_prep_conv(w1, b1, stride=1, dilation=dilation_base ** j,
                              elu=True),
                w2_mat=w2[:, :, 0].astype(jnp.bfloat16),
                ws_mat=ws[:, :, 0].astype(jnp.bfloat16),
                b_comb=(b2 + bs).reshape(dim, 1).astype(jnp.float32))))
        w, b = _conv_init(next(keys), mult * n_filters, mult * n_filters * 2,
                          ratio * 2)
        ops.append(("conv", _prep_conv(w, b, stride=ratio, dilation=1,
                                       elu=True)))
        mult *= 2
    if lstm:
        D = mult * n_filters
        layers = []
        for _ in range(lstm):
            k1, k2, k3, k4 = jax.random.split(next(keys), 4)
            s = 1.0 / math.sqrt(D)
            wih = jax.random.normal(k1, (4 * D, D), jnp.float32) * s
            whh = jax.random.normal(k2, (4 * D, D), jnp.float32) * s
            bih = jax.random.normal(k3, (4 * D,), jnp.float32) * s
            bhh = jax.random.normal(k4, (4 * D,), jnp.float32) * s
            layers.append((wih.T.astype(jnp.bfloat16),      # (D, 4D) i|f|g|o
                           whh.T.astype(jnp.bfloat16),
                           (bih + bhh).reshape(1, 4 * D).astype(jnp.float32)))
        ops.append(("lstm", layers))
    w, b = _conv_init(next(keys), mult * n_filters, dimension, last_kernel_size)
    ops.append(("conv", _prep_conv(w, b, stride=1, dilation=1, elu=True)))
    return ops


def seanet_encoder_forward(ops, x):
    for kind, p in ops:
        if kind == "conv":
            x = sconv1d(x, p)
        elif kind == "resblock":
            # shortcut(x) + block(x); block = [ELU, conv(k,d)], [ELU, conv(1)]
            y1 = sconv1d(x, p["c1"])
            x = res_tail_pallas(y1, x, p["w2_mat"], p["ws_mat"], p["b_comb"])
        elif kind == "lstm":
            x = slstm(x, p)
    return x


if __name__ == "__main__":
    key = jax.random.PRNGKey(0)
    kp, kx = jax.random.split(key)

    # Small config consistent with SEANetEncoder.__init__ (ratios=[2,2],
    # n_filters=8, dimension=16, lstm=2, kernel_size=7, residual_kernel_size=3)
    B, C, L = 2, 1, 64
    ops = init_seanet_encoder(
        kp, channels=C, dimension=16, n_filters=8, ratios=[2, 2],
        n_residual_layers=1, kernel_size=7, last_kernel_size=7,
        residual_kernel_size=3, dilation_base=2, compress=2, lstm=2)

    x = jax.random.normal(kx, (B, C, L), jnp.float32)
    out = seanet_encoder_forward(ops, x)
    out = jax.block_until_ready(out)
    assert out.shape == (B, 16, L // 4), out.shape
    assert bool(jnp.all(jnp.isfinite(out)))
    print("KERNEL_OK")
</pallas_src>

<mosaic_0001>
module attributes {stable_mosaic.version = 11 : i64} {
  func.func @_conv_kernel(%arg0: i32, %arg1: memref<1x1x70xf32, #tpu.memory_space<vmem>>, %arg2: memref<8x7xbf16, #tpu.memory_space<vmem>>, %arg3: memref<8x1xf32, #tpu.memory_space<vmem>>, %arg4: memref<1x8x64xf32, #tpu.memory_space<vmem>>) attributes {dimension_semantics = [#tpu.dimension_semantics<parallel>], iteration_bounds = array<i64: 2>, scalar_prefetch = 0 : i64, scratch_operands = 0 : i64, tpu.core_type = #tpu.core_type<tc>, window_params = [{transform_indices = @transform_0, window_bounds = array<i64: 1, 1, 70>}, {pipeline_mode = #tpu.pipeline_mode<synchronous>, transform_indices = @transform_1, window_bounds = array<i64: 8, 7>}, {pipeline_mode = #tpu.pipeline_mode<synchronous>, transform_indices = @transform_2, window_bounds = array<i64: 8, 1>}, {transform_indices = @transform_3, window_bounds = array<i64: 1, 8, 64>}]} {
    %c0 = arith.constant 0 : index
    %c0_0 = arith.constant 0 : index
    %c0_1 = arith.constant 0 : index
    %0 = vector.load %arg1[%c0, %c0_0, %c0_1] : memref<1x1x70xf32, #tpu.memory_space<vmem>>, vector<1x1x70xf32>
    %1 = vector.shape_cast %0 : vector<1x1x70xf32> to vector<1x70xf32>
    %2 = vector.extract_strided_slice %1 {offsets = [0, 0], sizes = [1, 64], strides = [1, 1]} : vector<1x70xf32> to vector<1x64xf32>
    %3 = vector.extract_strided_slice %1 {offsets = [0, 1], sizes = [1, 64], strides = [1, 1]} : vector<1x70xf32> to vector<1x64xf32>
    %4 = vector.extract_strided_slice %1 {offsets = [0, 2], sizes = [1, 64], strides = [1, 1]} : vector<1x70xf32> to vector<1x64xf32>
    %5 = vector.extract_strided_slice %1 {offsets = [0, 3], sizes = [1, 64], strides = [1, 1]} : vector<1x70xf32> to vector<1x64xf32>
    %6 = vector.extract_strided_slice %1 {offsets = [0, 4], sizes = [1, 64], strides = [1, 1]} : vector<1x70xf32> to vector<1x64xf32>
    %7 = vector.extract_strided_slice %1 {offsets = [0, 5], sizes = [1, 64], strides = [1, 1]} : vector<1x70xf32> to vector<1x64xf32>
    %8 = vector.extract_strided_slice %1 {offsets = [0, 6], sizes = [1, 64], strides = [1, 1]} : vector<1x70xf32> to vector<1x64xf32>
    %9 = tpu.concatenate %2, %3, %4, %5, %6, %7, %8 in 0 : vector<1x64xf32>, vector<1x64xf32>, vector<1x64xf32>, vector<1x64xf32>, vector<1x64xf32>, vector<1x64xf32>, vector<1x64xf32> -> vector<7x64xf32>
    %c0_2 = arith.constant 0 : index
    %c0_3 = arith.constant 0 : index
    %10 = vector.load %arg2[%c0_2, %c0_3] : memref<8x7xbf16, #tpu.memory_space<vmem>>, vector<8x7xbf16>
    %11 = arith.truncf %9 : vector<7x64xf32> to vector<7x64xbf16>
    %cst = arith.constant dense<0.000000e+00> : vector<8x64xf32>
    %12 = tpu.matmul %10, %11, %cst {dimension_numbers = #tpu.dot_dimension_numbers<[1], [0], [0], [1], [0, 0, 1, 1], [], []>} : vector<8x7xbf16>, vector<7x64xbf16>, vector<8x64xf32> -> vector<8x64xf32>
    %c0_4 = arith.constant 0 : index
    %c0_5 = arith.constant 0 : index
    %13 = vector.load %arg3[%c0_4, %c0_5] : memref<8x1xf32, #tpu.memory_space<vmem>>, vector<8x1xf32>
    %14 = vector.broadcast %13 : vector<8x1xf32> to vector<8x64xf32>
    %15 = arith.addf %12, %14 : vector<8x64xf32>
    %c0_6 = arith.constant 0 : index
    %c0_7 = arith.constant 0 : index
    %c0_8 = arith.constant 0 : index
    %16 = vector.load %arg4[%c0_6, %c0_7, %c0_8] : memref<1x8x64xf32, #tpu.memory_space<vmem>>, vector<1x8x64xf32>
    %17 = vector.shape_cast %16 : vector<1x8x64xf32> to vector<8x64xf32>
    %18 = vector.shape_cast %15 : vector<8x64xf32> to vector<1x8x64xf32>
    tpu.vector_store %arg4[%c0_6, %c0_7, %c0_8], %18 {strides = array<i32>} : memref<1x8x64xf32, #tpu.memory_space<vmem>>, vector<1x8x64xf32>,
    return
  }
  func.func @transform_0(%arg0: i32) -> (i32, i32, i32) {
    %c0_i32 = arith.constant 0 : i32
    %c0_i32_0 = arith.constant 0 : i32
    %c0_i32_1 = arith.constant 0 : i32
    return %arg0, %c0_i32, %c0_i32_0 : i32, i32, i32
  }
  func.func @transform_1(%arg0: i32) -> (i32, i32) {
    %c0_i32 = arith.constant 0 : i32
    %c0_i32_0 = arith.constant 0 : i32
    %c0_i32_1 = arith.constant 0 : i32
    return %c0_i32, %c0_i32_0 : i32, i32
  }
  func.func @transform_2(%arg0: i32) -> (i32, i32) {
    %c0_i32 = arith.constant 0 : i32
    %c0_i32_0 = arith.constant 0 : i32
    %c0_i32_1 = arith.constant 0 : i32
    return %c0_i32, %c0_i32_0 : i32, i32
  }
  func.func @transform_3(%arg0: i32) -> (i32, i32, i32) {
    %c0_i32 = arith.constant 0 : i32
    %c0_i32_0 = arith.constant 0 : i32
    %c0_i32_1 = arith.constant 0 : i32
    return %arg0, %c0_i32, %c0_i32_0 : i32, i32, i32
  }
}

</mosaic_0001>

<llo_original>
// kernel: tpu_custom_call.1
$region0: #{tpu_custom_call.1}
  #allocation0 [shape = 'u32[]', space=smem, size = 0x4, offset = 0x4, fixed_abs, tag = 'smem constant byte address 0x4 - core index']
  #allocation1 [shape = 'u32[144,128]{1,0:T(1,128)}', space=vmem, size = 0x12000, scoped, tag = 'internal scratch']
  %s0 = inlined_call_operand.vmem [shape: f32[2,1,70], index: 0, kind: input, shape index: {}]
  %s1 = inlined_call_operand.vmem [shape: bf16[8,7], index: 1, kind: input, shape index: {}]
  %s2 = inlined_call_operand.vmem [shape: f32[8,1], index: 2, kind: input, shape index: {}]
  %s3 = inlined_call_operand.hbm [shape: f32[2,8,64], index: 3, kind: output, shape index: {}]
  %s4 = sld [smem:[#allocation0]]
  $region45: #{tpu_custom_call.1} parent=0
    _
  %s6 = ssub.s32 1, %s4
  %s7 = scalar_select 0, %s6, %s4
  $region1: #{tpu_custom_call.1} parent=0
    #allocation2 [shape = 'u8[8192]{0}', space=vmem, size = 0x2000, scoped, tag = 'output window, operand 0']
    #allocation3 [shape = 's32[2]{0}', space=sflag, size = 0x8, scoped, tag = 'scoped memory for tpu_custom_call.1']
    %8 = vsyncpa [#allocation3], 0
    %s9 = scalar_lea.sflag [#allocation3], 1
    %10 = vsyncpa %s9, 0
    loop: start=0, step=1, limit=4
    $region2: #{tpu_custom_call.1} parent=1 // loop_pre_header
      _
    $region3: #{tpu_custom_call.1} parent=1 // loop_header
      %s12 = sphi 0, %s16
      %p13 = scmp.ge.s32.totalorder %s12, 4
      %s22 = sphi 0, %s24
      %s25 = sphi 0, %s22
      %s26 = sphi 0, %s25
      %s42 = sphi 0, %s26
      %s46 = sphi 0, %s46
      %s48 = sphi 0, %s46
      %s49 = sphi 0, %s48
      %s63 = sphi 0, %s49
      %s67 = sphi 0, %s67
      %s69 = sphi 0, %s67
      %s70 = sphi 0, %s69
      %s84 = sphi 0, %s70
      %s90 = sphi 0, %s92
      %s93 = sphi 0, %s90
      %s94 = sphi 0, %s93
      %s110 = sphi 0, %s94
    $region4: #{tpu_custom_call.1} parent=1 // loop_header_branch
      %15 = sbr.rel (%p13) target = $region8
    $region5: #{tpu_custom_call.1} parent=1 // loop_body
      %s17 = ssub.s32 %s12, 1
      %s18 = ssub.s32 %s12, 2
      %s19 = sadd.s32 %s12, 1
      %s20 = ssub.s32 %s12, %s19
      %p21 = scmp.eq.s32.totalorder %s20, 0
      %s23 = sadd.s32 %s22, 1
      %s24 = scalar_select %p21, %s22, %s23
      %p27 = pneg %p21
      %p28 = scmp.eq.s32.totalorder %s12, 1
      %p29 = por %p27, %p28
      %p30 = scmp.ne.s32.totalorder %s22, %s25
      %p31 = scmp.eq.s32.totalorder %s12, 0
      %p32 = por %p30, %p31
      %p33 = scmp.ne.s32.totalorder %s22, %s25
      %p34 = scmp.eq.s32.totalorder %s17, 1
      %p35 = por %p33, %p34
      %p36 = scmp.ne.s32.totalorder %s25, %s26
      %p37 = scmp.eq.s32.totalorder %s17, 0
      %p38 = por %p36, %p37
      %p39 = scmp.ne.s32.totalorder %s25, %s26
      %p40 = scmp.eq.s32.totalorder %s18, 1
      %p41 = por %p39, %p40
      %p43 = scmp.ne.s32.totalorder %s26, %s42
      %p44 = scmp.eq.s32.totalorder %s18, 0
      %p45 = por %p43, %p44
      %s47 = sadd.s32 %s46, 1
      %p50 = scmp.eq.s32.totalorder %s12, 1
      %p51 = scmp.ne.s32.totalorder %s46, %s48
      %p52 = scmp.eq.s32.totalorder %s12, 0
      %p53 = por %p51, %p52
      %p54 = scmp.ne.s32.totalorder %s46, %s48
      %p55 = scmp.eq.s32.totalorder %s17, 1
      %p56 = por %p54, %p55
      %p57 = scmp.ne.s32.totalorder %s48, %s49
      %p58 = scmp.eq.s32.totalorder %s17, 0
      %p59 = por %p57, %p58
      %p60 = scmp.ne.s32.totalorder %s48, %s49
      %p61 = scmp.eq.s32.totalorder %s18, 1
      %p62 = por %p60, %p61
      %p64 = scmp.ne.s32.totalorder %s49, %s63
      %p65 = scmp.eq.s32.totalorder %s18, 0
      %p66 = por %p64, %p65
      %s68 = sadd.s32 %s67, 1
      %p71 = scmp.eq.s32.totalorder %s12, 1
      %p72 = scmp.ne.s32.totalorder %s67, %s69
      %p73 = scmp.eq.s32.totalorder %s12, 0
      %p74 = por %p72, %p73
      %p75 = scmp.ne.s32.totalorder %s67, %s69
      %p76 = scmp.eq.s32.totalorder %s17, 1
      %p77 = por %p75, %p76
      %p78 = scmp.ne.s32.totalorder %s69, %s70
      %p79 = scmp.eq.s32.totalorder %s17, 0
      %p80 = por %p78, %p79
      %p81 = scmp.ne.s32.totalorder %s69, %s70
      %p82 = scmp.eq.s32.totalorder %s18, 1
      %p83 = por %p81, %p82
      %p85 = scmp.ne.s32.totalorder %s70, %s84
      %p86 = scmp.eq.s32.totalorder %s18, 0
      %p87 = por %p85, %p86
      %s88 = ssub.s32 %s12, %s19
      %p89 = scmp.eq.s32.totalorder %s88, 0
      %s91 = sadd.s32 %s90, 1
      %s92 = scalar_select %p89, %s90, %s91
      %p95 = pneg %p89
      %p96 = scmp.eq.s32.totalorder %s12, 1
      %p97 = por %p95, %p96
      %p98 = scmp.ne.s32.totalorder %s90, %s93
      %p99 = scmp.eq.s32.totalorder %s12, 0
      %p100 = por %p98, %p99
      %p101 = scmp.ne.s32.totalorder %s90, %s93
      %p102 = scmp.eq.s32.totalorder %s17, 1
      %p103 = por %p101, %p102
      %p104 = scmp.ne.s32.totalorder %s93, %s94
      %p105 = scmp.eq.s32.totalorder %s17, 0
      %p106 = por %p104, %p105
      %p107 = scmp.ne.s32.totalorder %s93, %s94
      %p108 = scmp.eq.s32.totalorder %s18, 1
      %p109 = por %p107, %p108
      %p111 = scmp.ne.s32.totalorder %s94, %s110
      %p112 = scmp.eq.s32.totalorder %s18, 0
      %p113 = por %p111, %p112
      %p114 = scmp.le.s32.totalorder 1, %s12
      %p115 = scmp.lt.s32.totalorder %s12, 3
      %p116 = pnand %p114, %p115
      %p117 = pneg %p116
      // Predicated region
      $region9: #{tpu_custom_call.1} parent=5 // pred_check
        _
      $region10: #{tpu_custom_call.1} parent=5 // pred_check_branch
        %119 = sbr.rel (%p116) target = $region12
      $region11: #{tpu_custom_call.1} parent=5 // pred_region
        %s120 = ssub.s32 %s12, 1
        // Predicated region
        $region13: #{tpu_custom_call.1} parent=11 // pred_check
          %p121 = pneg %p59
        $region14: #{tpu_custom_call.1} parent=11 // pred_check_branch
          %123 = sbr.rel (%p121) target = $region16
        $region15: #{tpu_custom_call.1} parent=11 // pred_region
          _
        $region16: #{tpu_custom_call.1} parent=11 // pred_fallthru
          _
        // Predicated region
        $region17: #{tpu_custom_call.1} parent=11 // pred_check
          %p124 = pneg %p80
        $region18: #{tpu_custom_call.1} parent=11 // pred_check_branch
          %126 = sbr.rel (%p124) target = $region20
        $region19: #{tpu_custom_call.1} parent=11 // pred_region
          _
        $region20: #{tpu_custom_call.1} parent=11 // pred_fallthru
          _
      $region12: #{tpu_custom_call.1} parent=5 // pred_fallthru
        _
      %p127 = scmp.lt.s32.totalorder %s12, 2
      // Predicated region
      $region21: #{tpu_custom_call.1} parent=5 // pred_check
        %p128 = pneg %p127
      $region22: #{tpu_custom_call.1} parent=5 // pred_check_branch
        %130 = sbr.rel (%p128) target = $region24
      $region23: #{tpu_custom_call.1} parent=5 // pred_region
        // Predicated region
        $region25: #{tpu_custom_call.1} parent=23 // pred_check
          %p131 = pneg %p32
        $region26: #{tpu_custom_call.1} parent=23 // pred_check_branch
          %133 = sbr.rel (%p131) target = $region28
        $region27: #{tpu_custom_call.1} parent=23 // pred_region
          %p134 = scmp.lt.s32.totalorder %s12, 1
          %s135 = scalar_select %p134, %s12, 1
          %s136 = scalar_lea.vmem %s0, %s135
        $region28: #{tpu_custom_call.1} parent=23 // pred_fallthru
          _
      $region24: #{tpu_custom_call.1} parent=5 // pred_fallthru
        _
      %p137 = scmp.le.s32.totalorder 1, %s12
      %p138 = scmp.lt.s32.totalorder %s12, 3
      %p139 = pnand %p137, %p138
      %p140 = pneg %p139
      // Predicated region
      $region29: #{tpu_custom_call.1} parent=5 // pred_check
        _
      $region30: #{tpu_custom_call.1} parent=5 // pred_check_branch
        %142 = sbr.rel (%p139) target = $region32
      $region31: #{tpu_custom_call.1} parent=5 // pred_region
        %s143 = ssub.s32 %s12, 1
        %p144 = scmp.lt.s32.totalorder %s17, 1
        %s145 = scalar_select %p144, %s17, 1
        %s146 = scalar_lea.vmem %s0, %s145
        %p147 = pneg %p38
        %p148 = pneg %p35
        %p149 = pneg %p59
        %p150 = pneg %p56
        %p151 = pneg %p80
        %p152 = pneg %p77
        %p153 = pneg %p106
        %p154 = pneg %p103
        %s155 = sand.u32 %s93, 1
        %s156 = scalar_lea.sflag [#allocation3], %s155
        %s157 = sand.u32 %s93, 1
        %s158 = smul.addr %s157, 8
        %s159 = scalar_lea.vmem [#allocation2], %s158
        %p160 = scmp.lt.s32.totalorder %s17, 1
        %s161 = scalar_select %p160, %s17, 1
        %s162 = scalar_lea.vmem %s0, %s161
        %v164 = vld [vmem:[%s162] sm:$0x1]
        %v166 = vlaneseq
        %v167 = vshrl.u32 %v166, 7
        %v168 = vsub.s32 0, %v167
        %v169 = vrot.slane %v164, %v168
        %170 = vrot.lane.b32.xlu0 %v169, 127
        %v171 = vpop.permute.xlu0 %170
        %173 = vrot.lane.b32.xlu0 %v169, 126
        %v174 = vpop.permute.xlu0 %173
        %176 = vrot.lane.b32.xlu0 %v169, 125
        %v177 = vpop.permute.xlu0 %176
        %179 = vrot.lane.b32.xlu0 %v169, 124
        %v180 = vpop.permute.xlu0 %179
        %182 = vrot.lane.b32.xlu0 %v169, 123
        %v183 = vpop.permute.xlu0 %182
        %185 = vrot.lane.b32.xlu0 %v169, 122
        %v186 = vpop.permute.xlu0 %185
        %vm188 = vcmask 1040384
        %v189 = vsel %vm188, %v164, %v171
        %vm190 = vcmask 1041408
        %v191 = vsel %vm190, %v189, %v174
        %vm192 = vcmask 1042432
        %v193 = vsel %vm192, %v191, %v177
        %vm194 = vcmask 1043456
        %v195 = vsel %vm194, %v193, %v180
        %vm196 = vcmask 1044480
        %v197 = vsel %vm196, %v195, %v183
        %vm198 = vcmask 1045504
        %v199 = vsel %vm198, %v197, %v186
        %v200 = vld [vmem:[%s1] sm:$0xf]
        %v201 = vpack.c.bf16 %v199, %v199
        %v202 = vld [vmem:[%s2] sm:$0xff]
        %204 = vset.pattern.permute.xlu0 0
        %205 = vperm.xlu0 %204, %v202
        %v206 = vpop.permute.xlu0 %205
        %vm208 = vcmask 56320
        %v210 = vsel %vm208, %v200, 0
        %v212 = vsel %vm192, 4294967295, 65535
        %v213 = vsel %vm194, %v212, 0
        %v215 = vand.u32 %v201, %v213
        %217 = vmatprep.subr.bf16.mxu0 0
        %218 = vmatpush1.bf16.msra.mxu0 0
        %219 = vmatprep.subr.bf16.mxu0 0
        %220 = vmatpush1.bf16.msra.mxu0 0
        %221 = vmatprep.subr.bf16.mxu0 0
        %222 = vmatpush1.bf16.msra.mxu0 0
        %223 = vmatprep.subr.bf16.mxu0 0
        %224 = vmatpush1.bf16.msra.mxu0 0
        %225 = vmatprep.subr.bf16.mxu0 0
        %226 = vmatpush1.bf16.msra.mxu0 0
        %227 = vmatprep.subr.bf16.mxu0 0
        %228 = vmatpush1.bf16.msra.mxu0 0
        %229 = vmatprep.subr.bf16.mxu0 0
        %230 = vmatpush1.bf16.msra.mxu0 0
        %231 = vmatprep.subr.bf16.mxu0 0
        %232 = vmatpush1.bf16.msra.mxu0 %v215
        %233 = vmatprep.subr.bf16.mxu0 0
        %234 = vmatpush2.bf16.msra.mxu0 0
        %235 = vmatprep.subr.bf16.mxu0 0
        %236 = vmatpush2.bf16.msra.mxu0 0
        %237 = vmatprep.subr.bf16.mxu0 0
        %238 = vmatpush2.bf16.msra.mxu0 0
        %239 = vmatprep.subr.bf16.mxu0 0
        %240 = vmatpush2.bf16.msra.mxu0 0
        %241 = vmatprep.subr.bf16.mxu0 0
        %242 = vmatpush2.bf16.msra.mxu0 0
        %243 = vmatprep.subr.bf16.mxu0 0
        %244 = vmatpush2.bf16.msra.mxu0 0
        %245 = vmatprep.subr.bf16.mxu0 0
        %246 = vmatpush2.bf16.msra.mxu0 0
        %247 = vmatprep.subr.bf16.mxu0 0
        %248 = vmatpush2.bf16.msra.mxu0 0
        %249 = vmatprep.mubr.bf16.mxu0 0
        %250 = vmatmul.mubr.bf16.gmra.mxu0 %v210
        %v251 = vpop.f32.mrf.mxu0
        %v252 = vadd.f32 %v206, %v251
        %v253 = vpop.f32.mrf.mxu0
        %v254 = vpop.f32.mrf.mxu0
        %v255 = vpop.f32.mrf.mxu0
        %256 = vdwg.mxu0
        %vm257 = vcmask 523264
        %258 = vst.msk [vmem:[%s159] sm:$0xff] %vm257, %v252
        %s259 = sand.u32 %s93, 1
        %s260 = scalar_lea.sflag [#allocation3], %s259
        %s261 = sand.u32 %s93, 1
        %s262 = smul.addr %s261, 8
        %s263 = scalar_lea.vmem [#allocation2], %s262
        // Predicated region
        $region33: #{tpu_custom_call.1} parent=31 // pred_check
          %p264 = pneg %p103
        $region34: #{tpu_custom_call.1} parent=31 // pred_check_branch
          %266 = sbr.rel (%p264) target = $region36
        $region35: #{tpu_custom_call.1} parent=31 // pred_region
          %s268 = ssub.s32 128, 128
          %269 = vsyncadd %s260, %s268
          %s270 = smul.addr %s17, 128
          %s271 = scalar_lea.hbm %s3, %s270
          %s273 = sshll.u32 %s263, 4
          %s274 = int_to_ptr.vmem [resolvable:$true] %s273
          %276 = dma.vmem_to_hbm [thread:$0]  %s274, 128, %s271, %s260
        $region36: #{tpu_custom_call.1} parent=31 // pred_fallthru
          _
      $region32: #{tpu_custom_call.1} parent=5 // pred_fallthru
        _
      %p277 = scmp.le.s32.totalorder 2, %s12
      // Predicated region
      $region37: #{tpu_custom_call.1} parent=5 // pred_check
        %p278 = pneg %p277
      $region38: #{tpu_custom_call.1} parent=5 // pred_check_branch
        %280 = sbr.rel (%p278) target = $region40
      $region39: #{tpu_custom_call.1} parent=5 // pred_region
        %s281 = ssub.s32 %s12, 2
        // Predicated region
        $region41: #{tpu_custom_call.1} parent=39 // pred_check
          %p282 = pneg %p109
        $region42: #{tpu_custom_call.1} parent=39 // pred_check_branch
          %284 = sbr.rel (%p282) target = $region44
        $region43: #{tpu_custom_call.1} parent=39 // pred_region
          %s285 = sand.u32 %s94, 1
          %s286 = scalar_lea.sflag [#allocation3], %s285
          %s287 = sand.u32 %s94, 1
          %s288 = smul.addr %s287, 8
          %s289 = scalar_lea.vmem [#allocation2], %s288
          %290 = dma.done %s286, 128
        $region44: #{tpu_custom_call.1} parent=39 // pred_fallthru
          _
      $region40: #{tpu_custom_call.1} parent=5 // pred_fallthru
        _
    $region6: #{tpu_custom_call.1} parent=1 // loop_footer
      %s16 = sadd.s32 1, %s12
    $region7: #{tpu_custom_call.1} parent=1 // loop_footer_branch
      %11 = sbr.rel target = $region3
    $region8: #{tpu_custom_call.1} parent=1 // loop_exit
      _
    %291 = vsyncpa [#allocation3], 1
    %s292 = scalar_lea.sflag [#allocation3], 1
    %293 = vsyncpa %s292, 1

</llo_original>
